<compile_context>
chip_gen: v5e
topology: v5e:2x2
jax: 0.10.0
libtpu: 0.0.40
codegen_flags: <defaults>
</compile_context>

<pallas_src>
import functools

import jax
import jax.numpy as jnp
import numpy as np
from jax.experimental import pallas as pl
from jax.experimental.pallas import tpu as pltpu

EPS = 1e-5


def _bn(x, gamma, beta):
    # BatchNorm1d, training mode: biased batch statistics over the batch axis.
    mean = jnp.mean(x, axis=0, keepdims=True)
    var = jnp.mean((x - mean) ** 2, axis=0, keepdims=True)
    return (x - mean) * jax.lax.rsqrt(var + EPS) * gamma + beta


def _round8(n):
    return ((n + 7) // 8) * 8


def make_layout(input_dim, hidden_dim, hid_dim):
    """Static row offsets for the packed (rows, lanes) parameter slab."""
    cat_dim = 2 * hid_dim
    lay = {}
    off = 0

    def block(name, rows):
        nonlocal off
        lay[name] = off
        off += _round8(rows)          # keep every matrix block sublane-aligned

    block("wg", input_dim)            # (input_dim, 4*hidden_dim)  fused LSTM gates
    block("cond_w", hidden_dim)       # (hidden_dim, hid_dim)      condition_mlp
    block("mlp2_w", cat_dim)          # (2*hid_dim, hid_dim)       hid_mlp2_task1
    block("mlp3_w", hid_dim)          # (hid_dim, hid_dim)         hid_mlp3_task1

    for name in ("b_g", "cond_b", "bn1_g", "bn1_b", "samp_b",
                 "bn2_g", "bn2_b", "mlp2_b", "bn3_g", "bn3_b",
                 "mlp3_b", "out_w", "out_b"):
        lay[name] = off               # one sublane row per vector
        off += 1

    rows = _round8(off)
    lanes = max(128, 4 * hidden_dim)
    return lay, rows, lanes


def representation_kernel(cond_ref, samp_ref, samp_w_ref, p_ref, o_ref,
                          *, input_dim, hidden_dim, hid_dim, lay):
    dot = lambda a, b: jnp.dot(a, b, preferred_element_type=jnp.float32)
    H, D = hidden_dim, hid_dim
    C = 2 * D
    p = p_ref

    x = cond_ref[...]                                          # (B, input_dim)

    # ---- lstm1, single step, h0 = c0 = 0: one fused 128-lane gate matmul ----
    wg = p[lay["wg"]:lay["wg"] + input_dim, :4 * H]            # (input_dim, 4H)
    bg = p[lay["b_g"]:lay["b_g"] + 1, :4 * H]                  # (1, 4H)
    z = dot(x, wg) + bg                                        # (B, 4H), gates i,f,g,o
    i_g = jax.nn.sigmoid(z[:, 0:H])
    g_g = jnp.tanh(z[:, 2 * H:3 * H])
    o_g = jax.nn.sigmoid(z[:, 3 * H:4 * H])
    # forget gate multiplies c0 == 0 -> intentionally not computed.
    h1 = o_g * jnp.tanh(i_g * g_g)                             # (B, H) == hid.squeeze(0)

    # ---- condition branch: relu(condition_mlp) -> batch_norm1 ----
    cond_w = p[lay["cond_w"]:lay["cond_w"] + H, :D]
    cond_b = p[lay["cond_b"]:lay["cond_b"] + 1, :D]
    last = jnp.maximum(dot(h1, cond_w) + cond_b, 0.0)
    last = _bn(last,
               p[lay["bn1_g"]:lay["bn1_g"] + 1, :D],
               p[lay["bn1_b"]:lay["bn1_b"] + 1, :D])           # (B, D)

    # ---- sample branch: relu(sample_mlp) ----
    samp_b = p[lay["samp_b"]:lay["samp_b"] + 1, :D]
    samp = jnp.maximum(dot(samp_ref[...], samp_w_ref[...]) + samp_b, 0.0)  # (B, D)

    # ---- cat -> batch_norm2 -> relu(hid_mlp2_task1) (single (2D -> D) matmul) ----
    cat = jnp.concatenate([last, samp], axis=-1)               # (B, 2D)
    cat = _bn(cat,
              p[lay["bn2_g"]:lay["bn2_g"] + 1, :C],
              p[lay["bn2_b"]:lay["bn2_b"] + 1, :C])
    mlp2_w = p[lay["mlp2_w"]:lay["mlp2_w"] + C, :D]
    mlp2_b = p[lay["mlp2_b"]:lay["mlp2_b"] + 1, :D]
    t = jnp.maximum(dot(cat, mlp2_w) + mlp2_b, 0.0)

    # ---- batch_norm3 -> relu(hid_mlp3_task1) ----
    t = _bn(t,
            p[lay["bn3_g"]:lay["bn3_g"] + 1, :D],
            p[lay["bn3_b"]:lay["bn3_b"] + 1, :D])
    mlp3_w = p[lay["mlp3_w"]:lay["mlp3_w"] + D, :D]
    mlp3_b = p[lay["mlp3_b"]:lay["mlp3_b"] + 1, :D]
    t = jnp.maximum(dot(t, mlp3_w) + mlp3_b, 0.0)              # (B, D)

    # ---- out_mlp2_task1 (D -> 1) as a lane reduction, then sigmoid ----
    out_w = p[lay["out_w"]:lay["out_w"] + 1, :D]               # (1, D)
    out_b = p[lay["out_b"]:lay["out_b"] + 1, 0:1]              # (1, 1)
    logit = jnp.sum(t * out_w, axis=-1, keepdims=True) + out_b
    o_ref[...] = jax.nn.sigmoid(logit)                         # (B, 1)


def representation_forward(conditions, samples, samp_w, slab,
                           *, input_dim, hidden_dim, hid_dim, lay):
    B = conditions.shape[0]
    kernel = functools.partial(representation_kernel,
                               input_dim=input_dim, hidden_dim=hidden_dim,
                               hid_dim=hid_dim, lay=lay)
    vmem = pl.BlockSpec(memory_space=pltpu.MemorySpace.VMEM)
    return pl.pallas_call(
        kernel,
        out_shape=jax.ShapeDtypeStruct((B, 1), jnp.float32),
        in_specs=[vmem, vmem, vmem, vmem],
        out_specs=vmem,
    )(conditions, samples, samp_w, slab)


def init_params(key, input_dim, hidden_dim, hid_dim):
    """Deterministic synthetic parameters matching the module's shapes."""
    ks = iter(jax.random.split(key, 32))

    def u(shape, scale=0.1):
        return jax.random.uniform(next(ks), shape, jnp.float32, -scale, scale)

    H, D = hidden_dim, hid_dim
    C = 2 * D

    # lstm1: weight_ih_l0 (4H, input_dim), biases b_ih + b_hh (weight_hh drops
    # out because h0 == 0).  Gate order i, f, g, o along the fused lane axis.
    w_ih = u((4 * H, input_dim))
    b_g = u((4 * H,)) + u((4 * H,))
    w_gates = w_ih.T                               # (input_dim, 4H)

    cond_w = u((D, H)).T;        cond_b = u((D,))
    samp_w = u((D, 1000), 0.03).T;  samp_b = u((D,))
    mlp2_w = u((D, C)).T;        mlp2_b = u((D,))  # hid_mlp2_task1: (2D -> D)
    mlp3_w = u((D, D)).T;        mlp3_b = u((D,))
    out_w = u((1, D));           out_b = u((1,))

    def bn(dim):
        return 1.0 + u((dim,), 0.05), u((dim,), 0.05)

    bn1_g, bn1_b = bn(D)
    bn2_g, bn2_b = bn(C)                           # hidden_dim == 2*hid_dim
    bn3_g, bn3_b = bn(D)

    return dict(w_gates=w_gates, b_g=b_g,
                cond_w=cond_w, cond_b=cond_b,
                samp_w=samp_w, samp_b=samp_b,
                mlp2_w=mlp2_w, mlp2_b=mlp2_b,
                mlp3_w=mlp3_w, mlp3_b=mlp3_b,
                out_w=out_w, out_b=out_b,
                bn1_g=bn1_g, bn1_b=bn1_b,
                bn2_g=bn2_g, bn2_b=bn2_b,
                bn3_g=bn3_g, bn3_b=bn3_b)


def pack_slab(p, lay, rows, lanes):
    """Pack all small parameters into one contiguous (rows, lanes) f32 slab."""
    slab = np.zeros((rows, lanes), np.float32)

    def put(name, arr):
        arr = np.asarray(arr, np.float32)
        if arr.ndim == 1:
            arr = arr[None, :]
        r, c = arr.shape
        slab[lay[name]:lay[name] + r, :c] = arr

    put("wg", p["w_gates"]); put("b_g", p["b_g"])
    put("cond_w", p["cond_w"]); put("cond_b", p["cond_b"])
    put("bn1_g", p["bn1_g"]); put("bn1_b", p["bn1_b"])
    put("samp_b", p["samp_b"])
    put("bn2_g", p["bn2_g"]); put("bn2_b", p["bn2_b"])
    put("mlp2_w", p["mlp2_w"]); put("mlp2_b", p["mlp2_b"])
    put("bn3_g", p["bn3_g"]); put("bn3_b", p["bn3_b"])
    put("mlp3_w", p["mlp3_w"]); put("mlp3_b", p["mlp3_b"])
    put("out_w", p["out_w"]); put("out_b", p["out_b"])
    return jnp.asarray(slab)


def reference_forward(conditions, samples, p, hidden_dim):
    """Pure-JAX replica of the PyTorch forward (validation)."""
    H = hidden_dim
    z = conditions @ p["w_gates"] + p["b_g"]
    i_g = jax.nn.sigmoid(z[:, 0:H])
    g_g = jnp.tanh(z[:, 2 * H:3 * H])
    o_g = jax.nn.sigmoid(z[:, 3 * H:4 * H])
    h1 = o_g * jnp.tanh(i_g * g_g)
    last = _bn(jnp.maximum(h1 @ p["cond_w"] + p["cond_b"], 0.0), p["bn1_g"], p["bn1_b"])
    samp = jnp.maximum(samples @ p["samp_w"] + p["samp_b"], 0.0)
    cat = _bn(jnp.concatenate([last, samp], axis=-1), p["bn2_g"], p["bn2_b"])
    t = jnp.maximum(cat @ p["mlp2_w"] + p["mlp2_b"], 0.0)
    t = _bn(t, p["bn3_g"], p["bn3_b"])
    t = jnp.maximum(t @ p["mlp3_w"] + p["mlp3_b"], 0.0)
    return jax.nn.sigmoid(t @ p["out_w"].T + p["out_b"])


if __name__ == "__main__":
    # hidden_dim must equal 2*hid_dim for the PyTorch forward to be
    # shape-consistent (cat of two hid_dim halves feeds BatchNorm1d(hidden_dim)
    # and Linear(hidden_dim, hid_dim)).
    B, input_dim, hidden_dim, hid_dim = 8, 24, 32, 16

    key = jax.random.PRNGKey(0)
    k_cond, k_samp, k_par = jax.random.split(key, 3)
    conditions = jax.random.normal(k_cond, (B, input_dim), jnp.float32)
    samples = jax.random.uniform(k_samp, (B, 1000), jnp.float32)  # sample_mlp in-dim is 1000
    params = init_params(k_par, input_dim, hidden_dim, hid_dim)

    lay, rows, lanes = make_layout(input_dim, hidden_dim, hid_dim)
    slab = pack_slab(params, lay, rows, lanes)

    out = jax.block_until_ready(representation_forward(
        conditions, samples, params["samp_w"], slab,
        input_dim=input_dim, hidden_dim=hidden_dim, hid_dim=hid_dim, lay=lay))
    ref = jax.block_until_ready(reference_forward(conditions, samples, params, hidden_dim))

    assert out.shape == (B, 1), out.shape
    np.testing.assert_allclose(np.asarray(out), np.asarray(ref), rtol=1e-4, atol=1e-5)
    print("KERNEL_OK")
</pallas_src>

<mosaic_0001>
module attributes {stable_mosaic.version = 11 : i64} {
  func.func @representation_kernel(%arg0: memref<8x24xf32, #tpu.memory_space<vmem>>, %arg1: memref<8x1000xf32, #tpu.memory_space<vmem>>, %arg2: memref<1000x16xf32, #tpu.memory_space<vmem>>, %arg3: memref<120x128xf32, #tpu.memory_space<vmem>>, %arg4: memref<8x1xf32, #tpu.memory_space<vmem>>) attributes {dimension_semantics = [], scalar_prefetch = 0 : i64, scratch_operands = 0 : i64, tpu.core_type = #tpu.core_type<tc>} {
    %c0 = arith.constant 0 : index
    %c0_0 = arith.constant 0 : index
    %0 = vector.load %arg0[%c0, %c0_0] : memref<8x24xf32, #tpu.memory_space<vmem>>, vector<8x24xf32>
    %c0_1 = arith.constant 0 : index
    %c0_2 = arith.constant 0 : index
    %1 = vector.load %arg3[%c0_1, %c0_2] : memref<120x128xf32, #tpu.memory_space<vmem>>, vector<24x128xf32>
    %c104 = arith.constant 104 : index
    %c0_3 = arith.constant 0 : index
    %2 = vector.load %arg3[%c104, %c0_3] : memref<120x128xf32, #tpu.memory_space<vmem>>, vector<1x128xf32>
    %cst = arith.constant dense<0.000000e+00> : vector<8x128xf32>
    %3 = tpu.matmul %0, %1, %cst {dimension_numbers = #tpu.dot_dimension_numbers<[1], [0], [0], [1], [0, 0, 1, 1], [], []>} : vector<8x24xf32>, vector<24x128xf32>, vector<8x128xf32> -> vector<8x128xf32>
    %4 = vector.broadcast %2 : vector<1x128xf32> to vector<8x128xf32>
    %5 = arith.addf %3, %4 : vector<8x128xf32>
    %6 = vector.extract_strided_slice %5 {offsets = [0, 0], sizes = [8, 32], strides = [1, 1]} : vector<8x128xf32> to vector<8x32xf32>
    %7 = arith.negf %6 : vector<8x32xf32>
    %8 = math.exp %7 : vector<8x32xf32>
    %cst_4 = arith.constant 1.000000e+00 : f32
    %9 = vector.broadcast %cst_4 : f32 to vector<8x32xf32>
    %10 = arith.addf %9, %8 : vector<8x32xf32>
    %11 = arith.divf %9, %10 : vector<8x32xf32>
    %12 = vector.extract_strided_slice %5 {offsets = [0, 64], sizes = [8, 32], strides = [1, 1]} : vector<8x128xf32> to vector<8x32xf32>
    %13 = math.tanh %12 : vector<8x32xf32>
    %14 = vector.extract_strided_slice %5 {offsets = [0, 96], sizes = [8, 32], strides = [1, 1]} : vector<8x128xf32> to vector<8x32xf32>
    %15 = arith.negf %14 : vector<8x32xf32>
    %16 = math.exp %15 : vector<8x32xf32>
    %cst_5 = arith.constant 1.000000e+00 : f32
    %17 = vector.broadcast %cst_5 : f32 to vector<8x32xf32>
    %18 = arith.addf %17, %16 : vector<8x32xf32>
    %19 = arith.divf %17, %18 : vector<8x32xf32>
    %20 = arith.mulf %11, %13 : vector<8x32xf32>
    %21 = math.tanh %20 : vector<8x32xf32>
    %22 = arith.mulf %19, %21 : vector<8x32xf32>
    %c24 = arith.constant 24 : index
    %c0_6 = arith.constant 0 : index
    %23 = vector.load %arg3[%c24, %c0_6] : memref<120x128xf32, #tpu.memory_space<vmem>>, vector<32x16xf32>
    %c105 = arith.constant 105 : index
    %c0_7 = arith.constant 0 : index
    %24 = vector.load %arg3[%c105, %c0_7] : memref<120x128xf32, #tpu.memory_space<vmem>>, vector<1x16xf32>
    %cst_8 = arith.constant dense<0.000000e+00> : vector<8x16xf32>
    %25 = tpu.matmul %22, %23, %cst_8 {dimension_numbers = #tpu.dot_dimension_numbers<[1], [0], [0], [1], [0, 0, 1, 1], [], []>} : vector<8x32xf32>, vector<32x16xf32>, vector<8x16xf32> -> vector<8x16xf32>
    %26 = vector.broadcast %24 : vector<1x16xf32> to vector<8x16xf32>
    %27 = arith.addf %25, %26 : vector<8x16xf32>
    %cst_9 = arith.constant 0.000000e+00 : f32
    %28 = vector.broadcast %cst_9 : f32 to vector<8x16xf32>
    %29 = arith.maximumf %27, %28 : vector<8x16xf32>
    %c106 = arith.constant 106 : index
    %c0_10 = arith.constant 0 : index
    %30 = vector.load %arg3[%c106, %c0_10] : memref<120x128xf32, #tpu.memory_space<vmem>>, vector<1x16xf32>
    %c107 = arith.constant 107 : index
    %c0_11 = arith.constant 0 : index
    %31 = vector.load %arg3[%c107, %c0_11] : memref<120x128xf32, #tpu.memory_space<vmem>>, vector<1x16xf32>
    %cst_12 = arith.constant dense<0.000000e+00> : vector<16xf32>
    %32 = vector.multi_reduction <add>, %29, %cst_12 [0] : vector<8x16xf32> to vector<16xf32>
    %33 = vector.shape_cast %32 : vector<16xf32> to vector<1x16xf32>
    %cst_13 = arith.constant 8.000000e+00 : f32
    %34 = vector.broadcast %cst_13 : f32 to vector<1x16xf32>
    %35 = arith.divf %33, %34 : vector<1x16xf32>
    %36 = vector.broadcast %35 : vector<1x16xf32> to vector<8x16xf32>
    %37 = arith.subf %29, %36 : vector<8x16xf32>
    %38 = arith.mulf %37, %37 : vector<8x16xf32>
    %cst_14 = arith.constant dense<0.000000e+00> : vector<16xf32>
    %39 = vector.multi_reduction <add>, %38, %cst_14 [0] : vector<8x16xf32> to vector<16xf32>
    %40 = vector.shape_cast %39 : vector<16xf32> to vector<1x16xf32>
    %cst_15 = arith.constant 8.000000e+00 : f32
    %41 = vector.broadcast %cst_15 : f32 to vector<1x16xf32>
    %42 = arith.divf %40, %41 : vector<1x16xf32>
    %43 = vector.broadcast %35 : vector<1x16xf32> to vector<8x16xf32>
    %44 = arith.subf %29, %43 : vector<8x16xf32>
    %cst_16 = arith.constant 9.99999974E-6 : f32
    %45 = vector.broadcast %cst_16 : f32 to vector<1x16xf32>
    %46 = arith.addf %42, %45 : vector<1x16xf32>
    %47 = math.rsqrt %46 : vector<1x16xf32>
    %48 = vector.broadcast %47 : vector<1x16xf32> to vector<8x16xf32>
    %49 = arith.mulf %44, %48 : vector<8x16xf32>
    %50 = vector.broadcast %30 : vector<1x16xf32> to vector<8x16xf32>
    %51 = arith.mulf %49, %50 : vector<8x16xf32>
    %52 = vector.broadcast %31 : vector<1x16xf32> to vector<8x16xf32>
    %53 = arith.addf %51, %52 : vector<8x16xf32>
    %c108 = arith.constant 108 : index
    %c0_17 = arith.constant 0 : index
    %54 = vector.load %arg3[%c108, %c0_17] : memref<120x128xf32, #tpu.memory_space<vmem>>, vector<1x16xf32>
    %c0_18 = arith.constant 0 : index
    %c0_19 = arith.constant 0 : index
    %55 = vector.load %arg1[%c0_18, %c0_19] : memref<8x1000xf32, #tpu.memory_space<vmem>>, vector<8x1000xf32>
    %c0_20 = arith.constant 0 : index
    %c0_21 = arith.constant 0 : index
    %56 = vector.load %arg2[%c0_20, %c0_21] : memref<1000x16xf32, #tpu.memory_space<vmem>>, vector<1000x16xf32>
    %cst_22 = arith.constant dense<0.000000e+00> : vector<8x16xf32>
    %57 = tpu.matmul %55, %56, %cst_22 {dimension_numbers = #tpu.dot_dimension_numbers<[1], [0], [0], [1], [0, 0, 1, 1], [], []>} : vector<8x1000xf32>, vector<1000x16xf32>, vector<8x16xf32> -> vector<8x16xf32>
    %58 = vector.broadcast %54 : vector<1x16xf32> to vector<8x16xf32>
    %59 = arith.addf %57, %58 : vector<8x16xf32>
    %cst_23 = arith.constant 0.000000e+00 : f32
    %60 = vector.broadcast %cst_23 : f32 to vector<8x16xf32>
    %61 = arith.maximumf %59, %60 : vector<8x16xf32>
    %62 = tpu.concatenate %53, %61 in 1 : vector<8x16xf32>, vector<8x16xf32> -> vector<8x32xf32>
    %c109 = arith.constant 109 : index
    %c0_24 = arith.constant 0 : index
    %63 = vector.load %arg3[%c109, %c0_24] : memref<120x128xf32, #tpu.memory_space<vmem>>, vector<1x32xf32>
    %c110 = arith.constant 110 : index
    %c0_25 = arith.constant 0 : index
    %64 = vector.load %arg3[%c110, %c0_25] : memref<120x128xf32, #tpu.memory_space<vmem>>, vector<1x32xf32>
    %cst_26 = arith.constant dense<0.000000e+00> : vector<32xf32>
    %65 = vector.multi_reduction <add>, %62, %cst_26 [0] : vector<8x32xf32> to vector<32xf32>
    %66 = vector.shape_cast %65 : vector<32xf32> to vector<1x32xf32>
    %cst_27 = arith.constant 8.000000e+00 : f32
    %67 = vector.broadcast %cst_27 : f32 to vector<1x32xf32>
    %68 = arith.divf %66, %67 : vector<1x32xf32>
    %69 = vector.broadcast %68 : vector<1x32xf32> to vector<8x32xf32>
    %70 = arith.subf %62, %69 : vector<8x32xf32>
    %71 = arith.mulf %70, %70 : vector<8x32xf32>
    %cst_28 = arith.constant dense<0.000000e+00> : vector<32xf32>
    %72 = vector.multi_reduction <add>, %71, %cst_28 [0] : vector<8x32xf32> to vector<32xf32>
    %73 = vector.shape_cast %72 : vector<32xf32> to vector<1x32xf32>
    %cst_29 = arith.constant 8.000000e+00 : f32
    %74 = vector.broadcast %cst_29 : f32 to vector<1x32xf32>
    %75 = arith.divf %73, %74 : vector<1x32xf32>
    %76 = vector.broadcast %68 : vector<1x32xf32> to vector<8x32xf32>
    %77 = arith.subf %62, %76 : vector<8x32xf32>
    %cst_30 = arith.constant 9.99999974E-6 : f32
    %78 = vector.broadcast %cst_30 : f32 to vector<1x32xf32>
    %79 = arith.addf %75, %78 : vector<1x32xf32>
    %80 = math.rsqrt %79 : vector<1x32xf32>
    %81 = vector.broadcast %80 : vector<1x32xf32> to vector<8x32xf32>
    %82 = arith.mulf %77, %81 : vector<8x32xf32>
    %83 = vector.broadcast %63 : vector<1x32xf32> to vector<8x32xf32>
    %84 = arith.mulf %82, %83 : vector<8x32xf32>
    %85 = vector.broadcast %64 : vector<1x32xf32> to vector<8x32xf32>
    %86 = arith.addf %84, %85 : vector<8x32xf32>
    %c56 = arith.constant 56 : index
    %c0_31 = arith.constant 0 : index
    %87 = vector.load %arg3[%c56, %c0_31] : memref<120x128xf32, #tpu.memory_space<vmem>>, vector<32x16xf32>
    %c111 = arith.constant 111 : index
    %c0_32 = arith.constant 0 : index
    %88 = vector.load %arg3[%c111, %c0_32] : memref<120x128xf32, #tpu.memory_space<vmem>>, vector<1x16xf32>
    %cst_33 = arith.constant dense<0.000000e+00> : vector<8x16xf32>
    %89 = tpu.matmul %86, %87, %cst_33 {dimension_numbers = #tpu.dot_dimension_numbers<[1], [0], [0], [1], [0, 0, 1, 1], [], []>} : vector<8x32xf32>, vector<32x16xf32>, vector<8x16xf32> -> vector<8x16xf32>
    %90 = vector.broadcast %88 : vector<1x16xf32> to vector<8x16xf32>
    %91 = arith.addf %89, %90 : vector<8x16xf32>
    %cst_34 = arith.constant 0.000000e+00 : f32
    %92 = vector.broadcast %cst_34 : f32 to vector<8x16xf32>
    %93 = arith.maximumf %91, %92 : vector<8x16xf32>
    %c112 = arith.constant 112 : index
    %c0_35 = arith.constant 0 : index
    %94 = vector.load %arg3[%c112, %c0_35] : memref<120x128xf32, #tpu.memory_space<vmem>>, vector<1x16xf32>
    %c113 = arith.constant 113 : index
    %c0_36 = arith.constant 0 : index
    %95 = vector.load %arg3[%c113, %c0_36] : memref<120x128xf32, #tpu.memory_space<vmem>>, vector<1x16xf32>
    %cst_37 = arith.constant dense<0.000000e+00> : vector<16xf32>
    %96 = vector.multi_reduction <add>, %93, %cst_37 [0] : vector<8x16xf32> to vector<16xf32>
    %97 = vector.shape_cast %96 : vector<16xf32> to vector<1x16xf32>
    %cst_38 = arith.constant 8.000000e+00 : f32
    %98 = vector.broadcast %cst_38 : f32 to vector<1x16xf32>
    %99 = arith.divf %97, %98 : vector<1x16xf32>
    %100 = vector.broadcast %99 : vector<1x16xf32> to vector<8x16xf32>
    %101 = arith.subf %93, %100 : vector<8x16xf32>
    %102 = arith.mulf %101, %101 : vector<8x16xf32>
    %cst_39 = arith.constant dense<0.000000e+00> : vector<16xf32>
    %103 = vector.multi_reduction <add>, %102, %cst_39 [0] : vector<8x16xf32> to vector<16xf32>
    %104 = vector.shape_cast %103 : vector<16xf32> to vector<1x16xf32>
    %cst_40 = arith.constant 8.000000e+00 : f32
    %105 = vector.broadcast %cst_40 : f32 to vector<1x16xf32>
    %106 = arith.divf %104, %105 : vector<1x16xf32>
    %107 = vector.broadcast %99 : vector<1x16xf32> to vector<8x16xf32>
    %108 = arith.subf %93, %107 : vector<8x16xf32>
    %cst_41 = arith.constant 9.99999974E-6 : f32
    %109 = vector.broadcast %cst_41 : f32 to vector<1x16xf32>
    %110 = arith.addf %106, %109 : vector<1x16xf32>
    %111 = math.rsqrt %110 : vector<1x16xf32>
    %112 = vector.broadcast %111 : vector<1x16xf32> to vector<8x16xf32>
    %113 = arith.mulf %108, %112 : vector<8x16xf32>
    %114 = vector.broadcast %94 : vector<1x16xf32> to vector<8x16xf32>
    %115 = arith.mulf %113, %114 : vector<8x16xf32>
    %116 = vector.broadcast %95 : vector<1x16xf32> to vector<8x16xf32>
    %117 = arith.addf %115, %116 : vector<8x16xf32>
    %c88 = arith.constant 88 : index
    %c0_42 = arith.constant 0 : index
    %118 = vector.load %arg3[%c88, %c0_42] : memref<120x128xf32, #tpu.memory_space<vmem>>, vector<16x16xf32>
    %c114 = arith.constant 114 : index
    %c0_43 = arith.constant 0 : index
    %119 = vector.load %arg3[%c114, %c0_43] : memref<120x128xf32, #tpu.memory_space<vmem>>, vector<1x16xf32>
    %cst_44 = arith.constant dense<0.000000e+00> : vector<8x16xf32>
    %120 = tpu.matmul %117, %118, %cst_44 {dimension_numbers = #tpu.dot_dimension_numbers<[1], [0], [0], [1], [0, 0, 1, 1], [], []>} : vector<8x16xf32>, vector<16x16xf32>, vector<8x16xf32> -> vector<8x16xf32>
    %121 = vector.broadcast %119 : vector<1x16xf32> to vector<8x16xf32>
    %122 = arith.addf %120, %121 : vector<8x16xf32>
    %cst_45 = arith.constant 0.000000e+00 : f32
    %123 = vector.broadcast %cst_45 : f32 to vector<8x16xf32>
    %124 = arith.maximumf %122, %123 : vector<8x16xf32>
    %c115 = arith.constant 115 : index
    %c0_46 = arith.constant 0 : index
    %125 = vector.load %arg3[%c115, %c0_46] : memref<120x128xf32, #tpu.memory_space<vmem>>, vector<1x16xf32>
    %c116 = arith.constant 116 : index
    %c0_47 = arith.constant 0 : index
    %126 = vector.load %arg3[%c116, %c0_47] : memref<120x128xf32, #tpu.memory_space<vmem>>, vector<1x1xf32>
    %127 = vector.broadcast %125 : vector<1x16xf32> to vector<8x16xf32>
    %128 = arith.mulf %124, %127 : vector<8x16xf32>
    %cst_48 = arith.constant dense<0.000000e+00> : vector<8xf32>
    %129 = vector.multi_reduction <add>, %128, %cst_48 [1] : vector<8x16xf32> to vector<8xf32>
    %130 = vector.shape_cast %129 : vector<8xf32> to vector<8x1xf32>
    %131 = vector.broadcast %126 : vector<1x1xf32> to vector<8x1xf32>
    %132 = arith.addf %130, %131 : vector<8x1xf32>
    %133 = arith.negf %132 : vector<8x1xf32>
    %134 = math.exp %133 : vector<8x1xf32>
    %cst_49 = arith.constant 1.000000e+00 : f32
    %135 = vector.broadcast %cst_49 : f32 to vector<8x1xf32>
    %136 = arith.addf %135, %134 : vector<8x1xf32>
    %137 = arith.divf %135, %136 : vector<8x1xf32>
    %c0_50 = arith.constant 0 : index
    %c0_51 = arith.constant 0 : index
    %138 = vector.load %arg4[%c0_50, %c0_51] : memref<8x1xf32, #tpu.memory_space<vmem>>, vector<8x1xf32>
    tpu.vector_store %arg4[%c0_50, %c0_51], %137 {strides = array<i32>} : memref<8x1xf32, #tpu.memory_space<vmem>>, vector<8x1xf32>,
    return
  }
}

</mosaic_0001>

<llo_original>
// kernel: tpu_custom_call.1
$region0: #{tpu_custom_call.1}
  #allocation0 [shape = 'u32[]', space=smem, size = 0x4, offset = 0x4, fixed_abs, tag = 'smem constant byte address 0x4 - core index']
  #allocation1 [shape = 'u32[72,128]{1,0:T(1,128)}', space=vmem, size = 0x9000, scoped, tag = 'internal scratch']
  %s0 = inlined_call_operand.vmem [shape: f32[8,24], index: 0, kind: input, shape index: {}]
  %s1 = inlined_call_operand.vmem [shape: f32[8,1000], index: 1, kind: input, shape index: {}]
  %s2 = inlined_call_operand.vmem [shape: f32[1000,16], index: 2, kind: input, shape index: {}]
  %s3 = inlined_call_operand.vmem [shape: f32[120,128], index: 3, kind: input, shape index: {}]
  %s4 = inlined_call_operand.vmem [shape: f32[8,1], index: 4, kind: output, shape index: {}]
  %s5 = sld [smem:[#allocation0]]
  $region26: #{tpu_custom_call.1} parent=0
    _
  %s7 = ssub.s32 1, %s5
  %s8 = scalar_select 0, %s7, %s5
  // Predicated region
  $region2: #{tpu_custom_call.1} parent=0 // pred_check
    _
  $region3: #{tpu_custom_call.1} parent=0 // pred_check_branch
    %10 = sbr.rel (0) target = $region5
  $region4: #{tpu_custom_call.1} parent=0 // pred_region
    _
  $region5: #{tpu_custom_call.1} parent=0 // pred_fallthru
    _
  // Predicated region
  $region6: #{tpu_custom_call.1} parent=0 // pred_check
    _
  $region7: #{tpu_custom_call.1} parent=0 // pred_check_branch
    %12 = sbr.rel (0) target = $region9
  $region8: #{tpu_custom_call.1} parent=0 // pred_region
    _
  $region9: #{tpu_custom_call.1} parent=0 // pred_fallthru
    _
  // Predicated region
  $region10: #{tpu_custom_call.1} parent=0 // pred_check
    _
  $region11: #{tpu_custom_call.1} parent=0 // pred_check_branch
    %14 = sbr.rel (0) target = $region13
  $region12: #{tpu_custom_call.1} parent=0 // pred_region
    _
  $region13: #{tpu_custom_call.1} parent=0 // pred_fallthru
    _
  // Predicated region
  $region14: #{tpu_custom_call.1} parent=0 // pred_check
    _
  $region15: #{tpu_custom_call.1} parent=0 // pred_check_branch
    %16 = sbr.rel (0) target = $region17
  $region16: #{tpu_custom_call.1} parent=0 // pred_region
    _
  $region17: #{tpu_custom_call.1} parent=0 // pred_fallthru
    _
  %v17 = vld [vmem:[%s0] sm:$0xff]
  %v18 = vld [vmem:[%s3] sm:$0xff]
  %v19 = vld [vmem:[%s3 + $0x8] sm:$0xff]
  %v20 = vld [vmem:[%s3 + $0x10] sm:$0xff]
  %v21 = vld [vmem:[%s3 + $0x68] sm:$0x1]
  %v22 = vperm.slane %v21, 0
  %vm23 = vcmask 195584
  %v25 = vsel %vm23, %v17, 0
  %27 = vmatpush.msra.mxu0 0.0
  %28 = vmatpush.msra.mxu0 0.0
  %29 = vmatpush.msra.mxu0 0.0
  %30 = vmatpush.msra.mxu0 0.0
  %31 = vmatpush.msra.mxu0 0.0
  %32 = vmatpush.msra.mxu0 0.0
  %33 = vmatpush.msra.mxu0 0.0
  %34 = vmatpush.msra.mxu0 0.0
  %35 = vmatpush.msra.mxu0 0.0
  %36 = vmatpush.msra.mxu0 0.0
  %37 = vmatpush.msra.mxu0 0.0
  %38 = vmatpush.msra.mxu0 0.0
  %39 = vmatpush.msra.mxu0 0.0
  %40 = vmatpush.msra.mxu0 %v20
  %41 = vmatpush.msra.mxu0 %v19
  %42 = vmatpush.msra.mxu0 %v18
  %43 = vmatmul.f32.gmra.mxu0 %v25
  %v44 = vpop.f32.mrf.mxu0
  %v45 = vadd.f32 %v22, %v44
  %46 = vdwg.mxu0
  %v47 = vxor.u32 %v45, 2147483648
  %v48 = vmul.f32 %v47, 1.442695
  %v49 = vpow.pop %v48
  %v50 = vadd.f32 %v49, 1.0
  %v51 = vrcp.pop %v50
  %v52 = vmul.f32 %v50, %v51
  %v53 = vsub.f32 1.0, %v52
  %v54 = vmul.f32 %v51, %v53
  %v55 = vadd.f32 %v51, %v54
  %vm56 = vweird.f32 %v50
  %vm57 = vweird.f32 %v51
  %vm58 = vmor %vm56, %vm57
  %v59 = vsel %vm58, %v51, %v55
  %v60 = vand.u32 2147483647, %v50
  %vm61 = vcmp.eq.f32.partialorder %v60, 8.507059e+37
  %v62 = vand.u32 %v50, 2147483648
  %v63 = vor.u32 1.1754944e-38, %v62
  %v64 = vsel %vm61, %v63, %v59
  %v65 = vmul.f32 1.0, %v64
  %v66 = vtanh.pop %v45
  %68 = vrot.lane.b32.xlu0 %v66, 64
  %v69 = vpop.permute.xlu0 %68
  %v71 = vmul.f32 %v65, %v69
  %v72 = vtanh.pop %v71
  %74 = vrot.lane.b32.xlu0 %v72, 96
  %v75 = vpop.permute.xlu0 %74
  %v77 = vmul.f32 %v65, %v75
  %v78 = vld [vmem:[%s3 + $0x18] sm:$0xff]
  %v79 = vld [vmem:[%s3 + $0x20] sm:$0xff]
  %v80 = vld [vmem:[%s3 + $0x28] sm:$0xff]
  %v81 = vld [vmem:[%s3 + $0x30] sm:$0xff]
  %v82 = vld [vmem:[%s3 + $0x69] sm:$0x1]
  %v83 = vperm.slane %v82, 0
  %85 = vrot.lane.b32.xlu0 %v77, 32
  %v86 = vpop.permute.xlu0 %85
  %vm87 = vcmask 261120
  %v88 = vsel %vm87, %v86, 0
  %90 = vmatpush.msra.mxu0 0.0
  %91 = vmatpush.msra.mxu0 0.0
  %92 = vmatpush.msra.mxu0 0.0
  %93 = vmatpush.msra.mxu0 0.0
  %94 = vmatpush.msra.mxu0 0.0
  %95 = vmatpush.msra.mxu0 0.0
  %96 = vmatpush.msra.mxu0 0.0
  %97 = vmatpush.msra.mxu0 0.0
  %98 = vmatpush.msra.mxu0 0.0
  %99 = vmatpush.msra.mxu0 0.0
  %100 = vmatpush.msra.mxu0 0.0
  %101 = vmatpush.msra.mxu0 0.0
  %102 = vmatpush.msra.mxu0 %v81
  %103 = vmatpush.msra.mxu0 %v80
  %104 = vmatpush.msra.mxu0 %v79
  %105 = vmatpush.msra.mxu0 %v78
  %106 = vmatmul.f32.gmra.mxu0 %v88
  %v107 = vpop.f32.mrf.mxu0
  %v108 = vadd.f32 %v83, %v107
  %109 = vdwg.mxu0
  %v110 = vmax.f32 %v108, 0.0
  %v111 = vld [vmem:[%s3 + $0x6a] sm:$0x1]
  %v112 = vld [vmem:[%s3 + $0x6b] sm:$0x1]
  %vm113 = vcmask 130048
  %v114 = vsel %vm113, %v110, 0.0
  %v115 = vrot.slane %v114, 4
  %v116 = vadd.f32 %v114, %v115
  %v117 = vrot.slane %v116, 2
  %v118 = vadd.f32 %v116, %v117
  %v119 = vrot.slane %v118, 1
  %v120 = vadd.f32 %v118, %v119
  %v121 = vrcp.pop 8.0
  %v122 = vmul.f32 8.0, %v121
  %v123 = vsub.f32 1.0, %v122
  %v124 = vmul.f32 %v121, %v123
  %v125 = vadd.f32 %v121, %v124
  %vm126 = vweird.f32 %v121
  %v127 = vsel %vm126, %v121, %v125
  %v128 = vmul.f32 %v120, %v127
  %v129 = vsub.f32 %v110, %v128
  %v130 = vmul.f32 %v129, %v129
  %v131 = vsel %vm113, %v130, 0.0
  %v132 = vrot.slane %v131, 4
  %v133 = vadd.f32 %v131, %v132
  %v134 = vrot.slane %v133, 2
  %v135 = vadd.f32 %v133, %v134
  %v136 = vrot.slane %v135, 1
  %v137 = vadd.f32 %v135, %v136
  %v138 = vmul.f32 %v137, %v127
  %v139 = vadd.f32 %v138, 1e-05
  %v140 = vrsqrt.pop %v139
  %v141 = vmul.f32 %v140, %v139
  %v142 = vmul.f32 %v141, %v140
  %v143 = vmul.f32 0.5, %v142
  %v144 = vsub.f32 1.5, %v143
  %v145 = vmul.f32 %v140, %v144
  %vm146 = vweird.f32 %v139
  %vm147 = vweird.f32 %v140
  %vm148 = vmor %vm146, %vm147
  %v149 = vsel %vm148, %v140, %v145
  %v150 = vmul.f32 %v129, %v149
  %v151 = vperm.slane %v111, 0
  %v152 = vmul.f32 %v150, %v151
  %v153 = vperm.slane %v112, 0
  %v154 = vadd.f32 %v152, %v153
  %v155 = vld [vmem:[%s3 + $0x6c] sm:$0x1]
  %v156 = vld [vmem:[%s1] sm:$0xff]
  %v157 = vld [vmem:[%s1 + $0x8] sm:$0xff]
  %v158 = vld [vmem:[%s1 + $0x10] sm:$0xff]
  %v159 = vld [vmem:[%s1 + $0x18] sm:$0xff]
  %v160 = vld [vmem:[%s1 + $0x20] sm:$0xff]
  %v161 = vld [vmem:[%s1 + $0x28] sm:$0xff]
  %v162 = vld [vmem:[%s1 + $0x30] sm:$0xff]
  %v163 = vld [vmem:[%s1 + $0x38] sm:$0xff]
  %v164 = vld [vmem:[%s2] sm:$0xff]
  %v165 = vld [vmem:[%s2 + $0x8] sm:$0xff]
  %v166 = vld [vmem:[%s2 + $0x10] sm:$0xff]
  %v167 = vld [vmem:[%s2 + $0x18] sm:$0xff]
  %v168 = vld [vmem:[%s2 + $0x20] sm:$0xff]
  %v169 = vld [vmem:[%s2 + $0x28] sm:$0xff]
  %v170 = vld [vmem:[%s2 + $0x30] sm:$0xff]
  %v171 = vld [vmem:[%s2 + $0x38] sm:$0xff]
  %v172 = vld [vmem:[%s2 + $0x40] sm:$0xff]
  %v173 = vld [vmem:[%s2 + $0x48] sm:$0xff]
  %v174 = vld [vmem:[%s2 + $0x50] sm:$0xff]
  %v175 = vld [vmem:[%s2 + $0x58] sm:$0xff]
  %v176 = vld [vmem:[%s2 + $0x60] sm:$0xff]
  %v177 = vld [vmem:[%s2 + $0x68] sm:$0xff]
  %v178 = vld [vmem:[%s2 + $0x70] sm:$0xff]
  %v179 = vld [vmem:[%s2 + $0x78] sm:$0xff]
  %v180 = vld [vmem:[%s2 + $0x80] sm:$0xff]
  %v181 = vld [vmem:[%s2 + $0x88] sm:$0xff]
  %v182 = vld [vmem:[%s2 + $0x90] sm:$0xff]
  %v183 = vld [vmem:[%s2 + $0x98] sm:$0xff]
  %v184 = vld [vmem:[%s2 + $0xa0] sm:$0xff]
  %v185 = vld [vmem:[%s2 + $0xa8] sm:$0xff]
  %v186 = vld [vmem:[%s2 + $0xb0] sm:$0xff]
  %v187 = vld [vmem:[%s2 + $0xb8] sm:$0xff]
  %v188 = vld [vmem:[%s2 + $0xc0] sm:$0xff]
  %v189 = vld [vmem:[%s2 + $0xc8] sm:$0xff]
  %v190 = vld [vmem:[%s2 + $0xd0] sm:$0xff]
  %v191 = vld [vmem:[%s2 + $0xd8] sm:$0xff]
  %v192 = vld [vmem:[%s2 + $0xe0] sm:$0xff]
  %v193 = vld [vmem:[%s2 + $0xe8] sm:$0xff]
  %v194 = vld [vmem:[%s2 + $0xf0] sm:$0xff]
  %v195 = vld [vmem:[%s2 + $0xf8] sm:$0xff]
  %v196 = vld [vmem:[%s2 + $0x100] sm:$0xff]
  %v197 = vld [vmem:[%s2 + $0x108] sm:$0xff]
  %v198 = vld [vmem:[%s2 + $0x110] sm:$0xff]
  %v199 = vld [vmem:[%s2 + $0x118] sm:$0xff]
  %v200 = vld [vmem:[%s2 + $0x120] sm:$0xff]
  %v201 = vld [vmem:[%s2 + $0x128] sm:$0xff]
  %v202 = vld [vmem:[%s2 + $0x130] sm:$0xff]
  %v203 = vld [vmem:[%s2 + $0x138] sm:$0xff]
  %v204 = vld [vmem:[%s2 + $0x140] sm:$0xff]
  %v205 = vld [vmem:[%s2 + $0x148] sm:$0xff]
  %v206 = vld [vmem:[%s2 + $0x150] sm:$0xff]
  %v207 = vld [vmem:[%s2 + $0x158] sm:$0xff]
  %v208 = vld [vmem:[%s2 + $0x160] sm:$0xff]
  %v209 = vld [vmem:[%s2 + $0x168] sm:$0xff]
  %v210 = vld [vmem:[%s2 + $0x170] sm:$0xff]
  %v211 = vld [vmem:[%s2 + $0x178] sm:$0xff]
  %v212 = vld [vmem:[%s2 + $0x180] sm:$0xff]
  %v213 = vld [vmem:[%s2 + $0x188] sm:$0xff]
  %v214 = vld [vmem:[%s2 + $0x190] sm:$0xff]
  %v215 = vld [vmem:[%s2 + $0x198] sm:$0xff]
  %v216 = vld [vmem:[%s2 + $0x1a0] sm:$0xff]
  %v217 = vld [vmem:[%s2 + $0x1a8] sm:$0xff]
  %v218 = vld [vmem:[%s2 + $0x1b0] sm:$0xff]
  %v219 = vld [vmem:[%s2 + $0x1b8] sm:$0xff]
  %v220 = vld [vmem:[%s2 + $0x1c0] sm:$0xff]
  %v221 = vld [vmem:[%s2 + $0x1c8] sm:$0xff]
  %v222 = vld [vmem:[%s2 + $0x1d0] sm:$0xff]
  %v223 = vld [vmem:[%s2 + $0x1d8] sm:$0xff]
  %v224 = vld [vmem:[%s2 + $0x1e0] sm:$0xff]
  %v225 = vld [vmem:[%s2 + $0x1e8] sm:$0xff]
  %v226 = vld [vmem:[%s2 + $0x1f0] sm:$0xff]
  %v227 = vld [vmem:[%s2 + $0x1f8] sm:$0xff]
  %v228 = vld [vmem:[%s2 + $0x200] sm:$0xff]
  %v229 = vld [vmem:[%s2 + $0x208] sm:$0xff]
  %v230 = vld [vmem:[%s2 + $0x210] sm:$0xff]
  %v231 = vld [vmem:[%s2 + $0x218] sm:$0xff]
  %v232 = vld [vmem:[%s2 + $0x220] sm:$0xff]
  %v233 = vld [vmem:[%s2 + $0x228] sm:$0xff]
  %v234 = vld [vmem:[%s2 + $0x230] sm:$0xff]
  %v235 = vld [vmem:[%s2 + $0x238] sm:$0xff]
  %v236 = vld [vmem:[%s2 + $0x240] sm:$0xff]
  %v237 = vld [vmem:[%s2 + $0x248] sm:$0xff]
  %v238 = vld [vmem:[%s2 + $0x250] sm:$0xff]
  %v239 = vld [vmem:[%s2 + $0x258] sm:$0xff]
  %v240 = vld [vmem:[%s2 + $0x260] sm:$0xff]
  %v241 = vld [vmem:[%s2 + $0x268] sm:$0xff]
  %v242 = vld [vmem:[%s2 + $0x270] sm:$0xff]
  %v243 = vld [vmem:[%s2 + $0x278] sm:$0xff]
  %v244 = vld [vmem:[%s2 + $0x280] sm:$0xff]
  %v245 = vld [vmem:[%s2 + $0x288] sm:$0xff]
  %v246 = vld [vmem:[%s2 + $0x290] sm:$0xff]
  %v247 = vld [vmem:[%s2 + $0x298] sm:$0xff]
  %v248 = vld [vmem:[%s2 + $0x2a0] sm:$0xff]
  %v249 = vld [vmem:[%s2 + $0x2a8] sm:$0xff]
  %v250 = vld [vmem:[%s2 + $0x2b0] sm:$0xff]
  %v251 = vld [vmem:[%s2 + $0x2b8] sm:$0xff]
  %v252 = vld [vmem:[%s2 + $0x2c0] sm:$0xff]
  %v253 = vld [vmem:[%s2 + $0x2c8] sm:$0xff]
  %v254 = vld [vmem:[%s2 + $0x2d0] sm:$0xff]
  %v255 = vld [vmem:[%s2 + $0x2d8] sm:$0xff]
  %v256 = vld [vmem:[%s2 + $0x2e0] sm:$0xff]
  %v257 = vld [vmem:[%s2 + $0x2e8] sm:$0xff]
  %v258 = vld [vmem:[%s2 + $0x2f0] sm:$0xff]
  %v259 = vld [vmem:[%s2 + $0x2f8] sm:$0xff]
  %v260 = vld [vmem:[%s2 + $0x300] sm:$0xff]
  %v261 = vld [vmem:[%s2 + $0x308] sm:$0xff]
  %v262 = vld [vmem:[%s2 + $0x310] sm:$0xff]
  %v263 = vld [vmem:[%s2 + $0x318] sm:$0xff]
  %v264 = vld [vmem:[%s2 + $0x320] sm:$0xff]
  %v265 = vld [vmem:[%s2 + $0x328] sm:$0xff]
  %v266 = vld [vmem:[%s2 + $0x330] sm:$0xff]
  %v267 = vld [vmem:[%s2 + $0x338] sm:$0xff]
  %v268 = vld [vmem:[%s2 + $0x340] sm:$0xff]
  %v269 = vld [vmem:[%s2 + $0x348] sm:$0xff]
  %v270 = vld [vmem:[%s2 + $0x350] sm:$0xff]
  %v271 = vld [vmem:[%s2 + $0x358] sm:$0xff]
  %v272 = vld [vmem:[%s2 + $0x360] sm:$0xff]
  %v273 = vld [vmem:[%s2 + $0x368] sm:$0xff]
  %v274 = vld [vmem:[%s2 + $0x370] sm:$0xff]
  %v275 = vld [vmem:[%s2 + $0x378] sm:$0xff]
  %v276 = vld [vmem:[%s2 + $0x380] sm:$0xff]
  %v277 = vld [vmem:[%s2 + $0x388] sm:$0xff]
  %v278 = vld [vmem:[%s2 + $0x390] sm:$0xff]
  %v279 = vld [vmem:[%s2 + $0x398] sm:$0xff]
  %v280 = vld [vmem:[%s2 + $0x3a0] sm:$0xff]
  %v281 = vld [vmem:[%s2 + $0x3a8] sm:$0xff]
  %v282 = vld [vmem:[%s2 + $0x3b0] sm:$0xff]
  %v283 = vld [vmem:[%s2 + $0x3b8] sm:$0xff]
  %v284 = vld [vmem:[%s2 + $0x3c0] sm:$0xff]
  %v285 = vld [vmem:[%s2 + $0x3c8] sm:$0xff]
  %v286 = vld [vmem:[%s2 + $0x3d0] sm:$0xff]
  %v287 = vld [vmem:[%s2 + $0x3d8] sm:$0xff]
  %v288 = vld [vmem:[%s2 + $0x3e0] sm:$0xff]
  %v289 = vperm.slane %v155, 0
  %vm290 = vcmask 850944
  %v292 = vsel %vm290, %v163, 0
  %294 = vmatpush.msra.mxu0 %v179
  %295 = vmatpush.msra.mxu0 %v178
  %296 = vmatpush.msra.mxu0 %v177
  %297 = vmatpush.msra.mxu0 %v176
  %298 = vmatpush.msra.mxu0 %v175
  %299 = vmatpush.msra.mxu0 %v174
  %300 = vmatpush.msra.mxu0 %v173
  %301 = vmatpush.msra.mxu0 %v172
  %302 = vmatpush.msra.mxu0 %v171
  %303 = vmatpush.msra.mxu0 %v170
  %304 = vmatpush.msra.mxu0 %v169
  %305 = vmatpush.msra.mxu0 %v168
  %306 = vmatpush.msra.mxu0 %v167
  %307 = vmatpush.msra.mxu0 %v166
  %308 = vmatpush.msra.mxu0 %v165
  %309 = vmatpush.msra.mxu0 %v164
  %310 = vmatmul.f32.gmra.mxu0 %v156
  %v311 = vpop.f32.mrf.mxu0
  %v312 = vadd.f32 %v289, %v311
  %313 = vdwg.mxu0
  %314 = vmatpush.msra.mxu0 %v195
  %315 = vmatpush.msra.mxu0 %v194
  %316 = vmatpush.msra.mxu0 %v193
  %317 = vmatpush.msra.mxu0 %v192
  %318 = vmatpush.msra.mxu0 %v191
  %319 = vmatpush.msra.mxu0 %v190
  %320 = vmatpush.msra.mxu0 %v189
  %321 = vmatpush.msra.mxu0 %v188
  %322 = vmatpush.msra.mxu0 %v187
  %323 = vmatpush.msra.mxu0 %v186
  %324 = vmatpush.msra.mxu0 %v185
  %325 = vmatpush.msra.mxu0 %v184
  %326 = vmatpush.msra.mxu0 %v183
  %327 = vmatpush.msra.mxu0 %v182
  %328 = vmatpush.msra.mxu0 %v181
  %329 = vmatpush.msra.mxu0 %v180
  %330 = vmatmul.f32.gmra.mxu0 %v157
  %v331 = vpop.f32.mrf.mxu0
  %v332 = vadd.f32 %v312, %v331
  %333 = vdwg.mxu0
  %334 = vmatpush.msra.mxu0 %v211
  %335 = vmatpush.msra.mxu0 %v210
  %336 = vmatpush.msra.mxu0 %v209
  %337 = vmatpush.msra.mxu0 %v208
  %338 = vmatpush.msra.mxu0 %v207
  %339 = vmatpush.msra.mxu0 %v206
  %340 = vmatpush.msra.mxu0 %v205
  %341 = vmatpush.msra.mxu0 %v204
  %342 = vmatpush.msra.mxu0 %v203
  %343 = vmatpush.msra.mxu0 %v202
  %344 = vmatpush.msra.mxu0 %v201
  %345 = vmatpush.msra.mxu0 %v200
  %346 = vmatpush.msra.mxu0 %v199
  %347 = vmatpush.msra.mxu0 %v198
  %348 = vmatpush.msra.mxu0 %v197
  %349 = vmatpush.msra.mxu0 %v196
  %350 = vmatmul.f32.gmra.mxu0 %v158
  %v351 = vpop.f32.mrf.mxu0
  %v352 = vadd.f32 %v332, %v351
  %353 = vdwg.mxu0
  %354 = vmatpush.msra.mxu0 %v227
  %355 = vmatpush.msra.mxu0 %v226
  %356 = vmatpush.msra.mxu0 %v225
  %357 = vmatpush.msra.mxu0 %v224
  %358 = vmatpush.msra.mxu0 %v223
  %359 = vmatpush.msra.mxu0 %v222
  %360 = vmatpush.msra.mxu0 %v221
  %361 = vmatpush.msra.mxu0 %v220
  %362 = vmatpush.msra.mxu0 %v219
  %363 = vmatpush.msra.mxu0 %v218
  %364 = vmatpush.msra.mxu0 %v217
  %365 = vmatpush.msra.mxu0 %v216
  %366 = vmatpush.msra.mxu0 %v215
  %367 = vmatpush.msra.mxu0 %v214
  %368 = vmatpush.msra.mxu0 %v213
  %369 = vmatpush.msra.mxu0 %v212
  %370 = vmatmul.f32.gmra.mxu0 %v159
  %v371 = vpop.f32.mrf.mxu0
  %v372 = vadd.f32 %v352, %v371
  %373 = vdwg.mxu0
  %374 = vmatpush.msra.mxu0 %v243
  %375 = vmatpush.msra.mxu0 %v242
  %376 = vmatpush.msra.mxu0 %v241
  %377 = vmatpush.msra.mxu0 %v240
  %378 = vmatpush.msra.mxu0 %v239
  %379 = vmatpush.msra.mxu0 %v238
  %380 = vmatpush.msra.mxu0 %v237
  %381 = vmatpush.msra.mxu0 %v236
  %382 = vmatpush.msra.mxu0 %v235
  %383 = vmatpush.msra.mxu0 %v234
  %384 = vmatpush.msra.mxu0 %v233
  %385 = vmatpush.msra.mxu0 %v232
  %386 = vmatpush.msra.mxu0 %v231
  %387 = vmatpush.msra.mxu0 %v230
  %388 = vmatpush.msra.mxu0 %v229
  %389 = vmatpush.msra.mxu0 %v228
  %390 = vmatmul.f32.gmra.mxu0 %v160
  %v391 = vpop.f32.mrf.mxu0
  %v392 = vadd.f32 %v372, %v391
  %393 = vdwg.mxu0
  %394 = vmatpush.msra.mxu0 %v259
  %395 = vmatpush.msra.mxu0 %v258
  %396 = vmatpush.msra.mxu0 %v257
  %397 = vmatpush.msra.mxu0 %v256
  %398 = vmatpush.msra.mxu0 %v255
  %399 = vmatpush.msra.mxu0 %v254
  %400 = vmatpush.msra.mxu0 %v253
  %401 = vmatpush.msra.mxu0 %v252
  %402 = vmatpush.msra.mxu0 %v251
  %403 = vmatpush.msra.mxu0 %v250
  %404 = vmatpush.msra.mxu0 %v249
  %405 = vmatpush.msra.mxu0 %v248
  %406 = vmatpush.msra.mxu0 %v247
  %407 = vmatpush.msra.mxu0 %v246
  %408 = vmatpush.msra.mxu0 %v245
  %409 = vmatpush.msra.mxu0 %v244
  %410 = vmatmul.f32.gmra.mxu0 %v161
  %v411 = vpop.f32.mrf.mxu0
  %v412 = vadd.f32 %v392, %v411
  %413 = vdwg.mxu0
  %414 = vmatpush.msra.mxu0 %v275
  %415 = vmatpush.msra.mxu0 %v274
  %416 = vmatpush.msra.mxu0 %v273
  %417 = vmatpush.msra.mxu0 %v272
  %418 = vmatpush.msra.mxu0 %v271
  %419 = vmatpush.msra.mxu0 %v270
  %420 = vmatpush.msra.mxu0 %v269
  %421 = vmatpush.msra.mxu0 %v268
  %422 = vmatpush.msra.mxu0 %v267
  %423 = vmatpush.msra.mxu0 %v266
  %424 = vmatpush.msra.mxu0 %v265
  %425 = vmatpush.msra.mxu0 %v264
  %426 = vmatpush.msra.mxu0 %v263
  %427 = vmatpush.msra.mxu0 %v262
  %428 = vmatpush.msra.mxu0 %v261
  %429 = vmatpush.msra.mxu0 %v260
  %430 = vmatmul.f32.gmra.mxu0 %v162
  %v431 = vpop.f32.mrf.mxu0
  %v432 = vadd.f32 %v412, %v431
  %433 = vdwg.mxu0
  %434 = vmatpush.msra.mxu0 0.0
  %435 = vmatpush.msra.mxu0 0.0
  %436 = vmatpush.msra.mxu0 0.0
  %437 = vmatpush.msra.mxu0 %v288
  %438 = vmatpush.msra.mxu0 %v287
  %439 = vmatpush.msra.mxu0 %v286
  %440 = vmatpush.msra.mxu0 %v285
  %441 = vmatpush.msra.mxu0 %v284
  %442 = vmatpush.msra.mxu0 %v283
  %443 = vmatpush.msra.mxu0 %v282
  %444 = vmatpush.msra.mxu0 %v281
  %445 = vmatpush.msra.mxu0 %v280
  %446 = vmatpush.msra.mxu0 %v279
  %447 = vmatpush.msra.mxu0 %v278
  %448 = vmatpush.msra.mxu0 %v277
  %449 = vmatpush.msra.mxu0 %v276
  %450 = vmatmul.f32.gmra.mxu0 %v292
  %v451 = vpop.f32.mrf.mxu0
  %v452 = vadd.f32 %v432, %v451
  %453 = vdwg.mxu0
  %v454 = vmax.f32 %v452, 0.0
  %456 = vrot.lane.b32.xlu0 %v454, 16
  %v457 = vpop.permute.xlu0 %456
  %v459 = vsel %vm113, %v154, %v457
  %v460 = vld [vmem:[%s3 + $0x6d] sm:$0x1]
  %v461 = vld [vmem:[%s3 + $0x6e] sm:$0x1]
  %v462 = vsel %vm87, %v459, 0.0
  %v463 = vrot.slane %v462, 4
  %v464 = vadd.f32 %v462, %v463
  %v465 = vrot.slane %v464, 2
  %v466 = vadd.f32 %v464, %v465
  %v467 = vrot.slane %v466, 1
  %v468 = vadd.f32 %v466, %v467
  %v469 = vmul.f32 %v468, %v127
  %v470 = vsub.f32 %v459, %v469
  %v471 = vmul.f32 %v470, %v470
  %v472 = vsel %vm87, %v471, 0.0
  %v473 = vrot.slane %v472, 4
  %v474 = vadd.f32 %v472, %v473
  %v475 = vrot.slane %v474, 2
  %v476 = vadd.f32 %v474, %v475
  %v477 = vrot.slane %v476, 1
  %v478 = vadd.f32 %v476, %v477
  %v479 = vmul.f32 %v478, %v127
  %v480 = vadd.f32 %v479, 1e-05
  %v481 = vrsqrt.pop %v480
  %v482 = vmul.f32 %v481, %v480
  %v483 = vmul.f32 %v482, %v481
  %v484 = vmul.f32 0.5, %v483
  %v485 = vsub.f32 1.5, %v484
  %v486 = vmul.f32 %v481, %v485
  %vm487 = vweird.f32 %v480
  %vm488 = vweird.f32 %v481
  %vm489 = vmor %vm487, %vm488
  %v490 = vsel %vm489, %v481, %v486
  %v491 = vmul.f32 %v470, %v490
  %v492 = vperm.slane %v460, 0
  %v493 = vmul.f32 %v491, %v492
  %v494 = vperm.slane %v461, 0
  %v495 = vadd.f32 %v493, %v494
  %v496 = vld [vmem:[%s3 + $0x38] sm:$0xff]
  %v497 = vld [vmem:[%s3 + $0x40] sm:$0xff]
  %v498 = vld [vmem:[%s3 + $0x48] sm:$0xff]
  %v499 = vld [vmem:[%s3 + $0x50] sm:$0xff]
  %v500 = vld [vmem:[%s3 + $0x6f] sm:$0x1]
  %v501 = vperm.slane %v500, 0
  %v503 = vsel %vm87, %v495, 0
  %505 = vmatpush.msra.mxu0 0.0
  %506 = vmatpush.msra.mxu0 0.0
  %507 = vmatpush.msra.mxu0 0.0
  %508 = vmatpush.msra.mxu0 0.0
  %509 = vmatpush.msra.mxu0 0.0
  %510 = vmatpush.msra.mxu0 0.0
  %511 = vmatpush.msra.mxu0 0.0
  %512 = vmatpush.msra.mxu0 0.0
  %513 = vmatpush.msra.mxu0 0.0
  %514 = vmatpush.msra.mxu0 0.0
  %515 = vmatpush.msra.mxu0 0.0
  %516 = vmatpush.msra.mxu0 0.0
  %517 = vmatpush.msra.mxu0 %v499
  %518 = vmatpush.msra.mxu0 %v498
  %519 = vmatpush.msra.mxu0 %v497
  %520 = vmatpush.msra.mxu0 %v496
  %521 = vmatmul.f32.gmra.mxu0 %v503
  %v522 = vpop.f32.mrf.mxu0
  %v523 = vadd.f32 %v501, %v522
  %524 = vdwg.mxu0
  %v525 = vmax.f32 %v523, 0.0
  %v526 = vld [vmem:[%s3 + $0x70] sm:$0x1]
  %v527 = vld [vmem:[%s3 + $0x71] sm:$0x1]
  %v528 = vsel %vm113, %v525, 0.0
  %v529 = vrot.slane %v528, 4
  %v530 = vadd.f32 %v528, %v529
  %v531 = vrot.slane %v530, 2
  %v532 = vadd.f32 %v530, %v531
  %v533 = vrot.slane %v532, 1
  %v534 = vadd.f32 %v532, %v533
  %v535 = vmul.f32 %v534, %v127
  %v536 = vsub.f32 %v525, %v535
  %v537 = vmul.f32 %v536, %v536
  %v538 = vsel %vm113, %v537, 0.0
  %v539 = vrot.slane %v538, 4
  %v540 = vadd.f32 %v538, %v539
  %v541 = vrot.slane %v540, 2
  %v542 = vadd.f32 %v540, %v541
  %v543 = vrot.slane %v542, 1
  %v544 = vadd.f32 %v542, %v543
  %v545 = vmul.f32 %v544, %v127
  %v546 = vadd.f32 %v545, 1e-05
  %v547 = vrsqrt.pop %v546
  %v548 = vmul.f32 %v547, %v546
  %v549 = vmul.f32 %v548, %v547
  %v550 = vmul.f32 0.5, %v549
  %v551 = vsub.f32 1.5, %v550
  %v552 = vmul.f32 %v547, %v551
  %vm553 = vweird.f32 %v546
  %vm554 = vweird.f32 %v547
  %vm555 = vmor %vm553, %vm554
  %v556 = vsel %vm555, %v547, %v552
  %v557 = vmul.f32 %v536, %v556
  %v558 = vperm.slane %v526, 0
  %v559 = vmul.f32 %v557, %v558
  %v560 = vperm.slane %v527, 0
  %v561 = vadd.f32 %v559, %v560
  %v562 = vld [vmem:[%s3 + $0x58] sm:$0xff]
  %v563 = vld [vmem:[%s3 + $0x60] sm:$0xff]
  %v564 = vld [vmem:[%s3 + $0x72] sm:$0x1]
  %v565 = vperm.slane %v564, 0
  %v567 = vsel %vm113, %v561, 0
  %569 = vmatpush.msra.mxu0 0.0
  %570 = vmatpush.msra.mxu0 0.0
  %571 = vmatpush.msra.mxu0 0.0
  %572 = vmatpush.msra.mxu0 0.0
  %573 = vmatpush.msra.mxu0 0.0
  %574 = vmatpush.msra.mxu0 0.0
  %575 = vmatpush.msra.mxu0 0.0
  %576 = vmatpush.msra.mxu0 0.0
  %577 = vmatpush.msra.mxu0 0.0
  %578 = vmatpush.msra.mxu0 0.0
  %579 = vmatpush.msra.mxu0 0.0
  %580 = vmatpush.msra.mxu0 0.0
  %581 = vmatpush.msra.mxu0 0.0
  %582 = vmatpush.msra.mxu0 0.0
  %583 = vmatpush.msra.mxu0 %v563
  %584 = vmatpush.msra.mxu0 %v562
  %585 = vmatmul.f32.gmra.mxu0 %v567
  %v586 = vpop.f32.mrf.mxu0
  %v587 = vadd.f32 %v565, %v586
  %588 = vdwg.mxu0
  %v589 = vmax.f32 %v587, 0.0
  %v590 = vld [vmem:[%s3 + $0x73] sm:$0x1]
  %v591 = vld [vmem:[%s3 + $0x74] sm:$0x1]
  %v592 = vperm.slane %v590, 0
  %v593 = vmul.f32 %v589, %v592
  %v594 = vsel %vm113, %v593, 0.0
  %595 = vadd.xlane.f32.xlu0 %v594
  %v596 = vpop.xlane.xlu0 %595
  %v597 = vperm.slane %v591, 0
  %v598 = vadd.f32 %v596, %v597
  %v599 = vxor.u32 %v598, 2147483648
  %v600 = vmul.f32 %v599, 1.442695
  %v601 = vpow.pop %v600
  %v602 = vadd.f32 %v601, 1.0
  %v603 = vrcp.pop %v602
  %v604 = vmul.f32 %v602, %v603
  %v605 = vsub.f32 1.0, %v604
  %v606 = vmul.f32 %v603, %v605
  %v607 = vadd.f32 %v603, %v606
  %vm608 = vweird.f32 %v602
  %vm609 = vweird.f32 %v603
  %vm610 = vmor %vm608, %vm609
  %v611 = vsel %vm610, %v603, %v607
  %v612 = vand.u32 2147483647, %v602
  %vm613 = vcmp.eq.f32.partialorder %v612, 8.507059e+37
  %v614 = vand.u32 %v602, 2147483648
  %v615 = vor.u32 1.1754944e-38, %v614
  %v616 = vsel %vm613, %v615, %v611
  %v617 = vmul.f32 1.0, %v616
  %vm618 = vcmask 7168
  %619 = vst.msk [vmem:[%s4] sm:$0xff] %vm618, %v617
  // Predicated region
  $region18: #{tpu_custom_call.1} parent=0 // pred_check
    _
  $region19: #{tpu_custom_call.1} parent=0 // pred_check_branch
    %621 = sbr.rel (0) target = $region21
  $region20: #{tpu_custom_call.1} parent=0 // pred_region
    _
  $region21: #{tpu_custom_call.1} parent=0 // pred_fallthru
    _
  // Predicated region
  $region22: #{tpu_custom_call.1} parent=0 // pred_check
    _
  $region23: #{tpu_custom_call.1} parent=0 // pred_check_branch
    %623 = sbr.rel (0) target = $region25
  $region24: #{tpu_custom_call.1} parent=0 // pred_region
    _
  $region25: #{tpu_custom_call.1} parent=0 // pred_fallthru
    _

</llo_original>
